<compile_context>
chip_gen: v7x
topology: tpu7x:2x2x1
jax: 0.10.0
libtpu: 0.0.40
codegen_flags: <defaults>
</compile_context>

<pallas_src>
import jax
import jax.numpy as jnp
from jax.experimental import pallas as pl
from jax.experimental.pallas import tpu as pltpu


def _lm_criterion_kernel(preds_ref, labels_ref, masks_ref, out_ref):
    logits = preds_ref[...].astype(jnp.float32)        # (tile_n, V)
    labels = labels_ref[...]                            # (tile_n, 1) int32
    masks = masks_ref[...].astype(jnp.float32)          # (tile_n, 1)

    # numerically-stable log-sum-exp over vocab; reuse `shifted` for the gather
    m = jnp.max(logits, axis=-1, keepdims=True)
    shifted = logits - m
    sum_exp = jnp.sum(jnp.exp(shifted), axis=-1, keepdims=True)

    # gather logit at the label index via one-hot compare (no dynamic gather on TPU)
    col = jax.lax.broadcasted_iota(jnp.int32, shifted.shape, 1)
    picked = jnp.sum(jnp.where(col == labels, shifted, 0.0), axis=-1, keepdims=True)

    # ce = lse - logit[label] = (m + log(sum_exp)) - (picked + m) = log(sum_exp) - picked
    ce = jnp.log(sum_exp) - picked                       # (tile_n, 1)
    out_ref[...] = ce * masks                            # per-row masked loss


def _choose_tile_n(N, V, itemsize):
    """Pick a row tile sized to ~8 MiB of logits, multiple of 8, capped sensibly."""
    target_bytes = 8 * 1024 * 1024
    tile = target_bytes // max(V * itemsize, 1)
    tile = max(8, (tile // 8) * 8)
    tile = min(tile, 1024)
    n_pad8 = ((N + 7) // 8) * 8
    tile = min(tile, max(8, n_pad8))
    tile = max(8, (tile // 8) * 8)
    return tile


def language_model_criterion(preds, labels, masks):
    """preds: (B, T, V) float, labels: (B, >=T) int, masks: (B, >=T) float -> scalar f32."""
    B, T, V = preds.shape
    labels = labels[:, :T].astype(jnp.int32)
    masks = masks[:, :T].astype(jnp.float32)

    N = B * T
    preds_flat = preds.reshape(N, V)                     # keep original dtype (bf16 stays bf16)
    labels_flat = labels.reshape(N, 1)
    masks_flat = masks.reshape(N, 1)

    itemsize = jnp.dtype(preds.dtype).itemsize
    tile_n = _choose_tile_n(N, V, itemsize)

    # pad N up to a multiple of tile_n with zero-mask rows (label 0 is a valid index)
    n_tiles = pl.cdiv(N, tile_n)
    N_pad = n_tiles * tile_n
    if N_pad != N:
        pad = N_pad - N
        preds_flat = jnp.pad(preds_flat, ((0, pad), (0, 0)))
        labels_flat = jnp.pad(labels_flat, ((0, pad), (0, 0)))
        masks_flat = jnp.pad(masks_flat, ((0, pad), (0, 0)))

    # VMEM budget: double-buffered preds tile + small label/mask/out tiles + headroom.
    tile_bytes = tile_n * V * itemsize
    aux_bytes = tile_n * (4 + 4 + 4)
    needed = 2 * (tile_bytes + aux_bytes)
    vmem_limit = min(int(needed * 1.25) + (4 << 20), 48 << 20)  # safe on v7x (64 MiB phys)

    cost = pl.CostEstimate(
        flops=int(5 * N_pad * V),
        transcendentals=int(N_pad * V),
        bytes_accessed=int(N_pad * V * itemsize + N_pad * 12),
    )

    per_row = pl.pallas_call(
        _lm_criterion_kernel,
        out_shape=jax.ShapeDtypeStruct((N_pad, 1), jnp.float32),
        grid_spec=pltpu.PrefetchScalarGridSpec(
            num_scalar_prefetch=0,
            grid=(n_tiles,),
            in_specs=[
                pl.BlockSpec((tile_n, V), lambda i: (i, 0)),
                pl.BlockSpec((tile_n, 1), lambda i: (i, 0)),
                pl.BlockSpec((tile_n, 1), lambda i: (i, 0)),
            ],
            out_specs=pl.BlockSpec((tile_n, 1), lambda i: (i, 0)),
        ),
        compiler_params=pltpu.CompilerParams(
            dimension_semantics=("parallel",),          # each tile owns its output rows
            vmem_limit_bytes=vmem_limit,
        ),
        cost_estimate=cost,
    )(preds_flat, labels_flat, masks_flat)

    # final reduction (padded rows contribute 0 because their masks are 0)
    return jnp.sum(per_row) / jnp.float32(B)


def _reference(preds, labels, masks):
    B, T, V = preds.shape
    labels = labels[:, :T].astype(jnp.int32)
    masks = masks[:, :T].astype(jnp.float32)
    logp = jax.nn.log_softmax(preds.astype(jnp.float32), axis=-1)
    picked = jnp.take_along_axis(logp, labels[..., None], axis=-1)[..., 0]
    ce = -picked
    return jnp.sum(ce * masks) / B


if __name__ == "__main__":
    key = jax.random.PRNGKey(0)

    # Case 1: B*T a multiple of 8, labels/masks longer than T (exercises slicing).
    B, T, V = 2, 8, 32
    k1, k2, k3, k4, k5, k6 = jax.random.split(key, 6)
    preds = jax.random.normal(k1, (B, T, V), dtype=jnp.float32)
    labels = jax.random.randint(k2, (B, T + 2), 0, V, dtype=jnp.int32)
    masks = (jax.random.uniform(k3, (B, T + 2)) > 0.3).astype(jnp.float32)

    loss = jax.block_until_ready(language_model_criterion(preds, labels, masks))
    ref = _reference(preds, labels, masks)
    assert jnp.allclose(loss, ref, rtol=1e-5, atol=1e-5), (loss, ref)

    # Case 2: B*T NOT a multiple of 8 (exercises zero-mask padding path).
    B2, T2, V2 = 3, 5, 128
    preds2 = jax.random.normal(k4, (B2, T2, V2), dtype=jnp.float32)
    labels2 = jax.random.randint(k5, (B2, T2), 0, V2, dtype=jnp.int32)
    masks2 = (jax.random.uniform(k6, (B2, T2)) > 0.3).astype(jnp.float32)

    loss2 = jax.block_until_ready(language_model_criterion(preds2, labels2, masks2))
    ref2 = _reference(preds2, labels2, masks2)
    assert jnp.allclose(loss2, ref2, rtol=1e-5, atol=1e-5), (loss2, ref2)

    print("KERNEL_OK")
</pallas_src>

<mosaic_0001>
module attributes {stable_mosaic.version = 11 : i64} {
  func.func @_lm_criterion_kernel(%arg0: i32, %arg1: memref<16x32xf32, #tpu.memory_space<vmem>>, %arg2: memref<16x1xi32, #tpu.memory_space<vmem>>, %arg3: memref<16x1xf32, #tpu.memory_space<vmem>>, %arg4: memref<16x1xf32, #tpu.memory_space<vmem>>) attributes {dimension_semantics = [#tpu.dimension_semantics<parallel>], iteration_bounds = array<i64: 1>, scalar_prefetch = 0 : i64, scratch_operands = 0 : i64, tpu.core_type = #tpu.core_type<tc>, window_params = [{transform_indices = @transform_0, window_bounds = array<i64: 16, 32>}, {transform_indices = @transform_1, window_bounds = array<i64: 16, 1>}, {transform_indices = @transform_2, window_bounds = array<i64: 16, 1>}, {transform_indices = @transform_3, window_bounds = array<i64: 16, 1>}]} {
    %c0 = arith.constant 0 : index
    %c0_0 = arith.constant 0 : index
    %0 = vector.load %arg1[%c0, %c0_0] : memref<16x32xf32, #tpu.memory_space<vmem>>, vector<16x32xf32>
    %c0_1 = arith.constant 0 : index
    %c0_2 = arith.constant 0 : index
    %1 = vector.load %arg2[%c0_1, %c0_2] : memref<16x1xi32, #tpu.memory_space<vmem>>, vector<16x1xi32>
    %c0_3 = arith.constant 0 : index
    %c0_4 = arith.constant 0 : index
    %2 = vector.load %arg3[%c0_3, %c0_4] : memref<16x1xf32, #tpu.memory_space<vmem>>, vector<16x1xf32>
    %cst = arith.constant dense<0xFF800000> : vector<16xf32>
    %3 = vector.multi_reduction <maximumf>, %0, %cst [1] : vector<16x32xf32> to vector<16xf32>
    %4 = vector.shape_cast %3 : vector<16xf32> to vector<16x1xf32>
    %5 = vector.broadcast %4 : vector<16x1xf32> to vector<16x32xf32>
    %6 = arith.subf %0, %5 : vector<16x32xf32>
    %7 = math.exp %6 : vector<16x32xf32>
    %cst_5 = arith.constant dense<0.000000e+00> : vector<16xf32>
    %8 = vector.multi_reduction <add>, %7, %cst_5 [1] : vector<16x32xf32> to vector<16xf32>
    %9 = vector.shape_cast %8 : vector<16xf32> to vector<16x1xf32>
    %10 = tpu.iota {dimensions = array<i32: 1>} : vector<16x32xi32>
    %11 = vector.broadcast %1 : vector<16x1xi32> to vector<16x32xi32>
    %12 = arith.cmpi eq, %10, %11 : vector<16x32xi32>
    %cst_6 = arith.constant 0.000000e+00 : f32
    %13 = vector.broadcast %cst_6 : f32 to vector<16x32xf32>
    %14 = arith.select %12, %6, %13 : vector<16x32xi1>, vector<16x32xf32>
    %cst_7 = arith.constant dense<0.000000e+00> : vector<16xf32>
    %15 = vector.multi_reduction <add>, %14, %cst_7 [1] : vector<16x32xf32> to vector<16xf32>
    %16 = vector.shape_cast %15 : vector<16xf32> to vector<16x1xf32>
    %17 = math.log %9 : vector<16x1xf32>
    %18 = arith.subf %17, %16 : vector<16x1xf32>
    %19 = arith.mulf %18, %2 : vector<16x1xf32>
    %c0_8 = arith.constant 0 : index
    %c0_9 = arith.constant 0 : index
    %20 = vector.load %arg4[%c0_8, %c0_9] : memref<16x1xf32, #tpu.memory_space<vmem>>, vector<16x1xf32>
    tpu.vector_store %arg4[%c0_8, %c0_9], %19 {strides = array<i32>} : memref<16x1xf32, #tpu.memory_space<vmem>>, vector<16x1xf32>,
    return
  }
  func.func @transform_0(%arg0: i32) -> (i32, i32) {
    %c0_i32 = arith.constant 0 : i32
    %c0_i32_0 = arith.constant 0 : i32
    return %arg0, %c0_i32 : i32, i32
  }
  func.func @transform_1(%arg0: i32) -> (i32, i32) {
    %c0_i32 = arith.constant 0 : i32
    %c0_i32_0 = arith.constant 0 : i32
    return %arg0, %c0_i32 : i32, i32
  }
  func.func @transform_2(%arg0: i32) -> (i32, i32) {
    %c0_i32 = arith.constant 0 : i32
    %c0_i32_0 = arith.constant 0 : i32
    return %arg0, %c0_i32 : i32, i32
  }
  func.func @transform_3(%arg0: i32) -> (i32, i32) {
    %c0_i32 = arith.constant 0 : i32
    %c0_i32_0 = arith.constant 0 : i32
    return %arg0, %c0_i32 : i32, i32
  }
}

</mosaic_0001>

<llo_original>
// kernel: tpu_custom_call.1
$region0: #{tpu_custom_call.1}
  #allocation0 [shape = 'u32[]', space=smem, size = 0x4, offset = 0x4, fixed_abs, tag = 'smem constant byte address 0x4 - core index']
  #allocation1 [shape = 'u32[144,128]{1,0:T(1,128)}', space=vmem, size = 0x12000, scoped, tag = 'internal scratch']
  %s0 = inlined_call_operand.vmem [shape: f32[16,32], index: 0, kind: input, shape index: {}]
  %s1 = inlined_call_operand.vmem [shape: s32[16,1], index: 1, kind: input, shape index: {}]
  %s2 = inlined_call_operand.vmem [shape: f32[16,1], index: 2, kind: input, shape index: {}]
  %s3 = inlined_call_operand.vmem [shape: f32[16,1], index: 3, kind: output, shape index: {}]
  %s4 = sld [smem:[#allocation0]]
  $region22: #{tpu_custom_call.1} parent=0
    _
  %s6 = ssub.s32 1, %s4
  %s7 = scalar_select 0, %s6, %s4
  // Predicated region
  $region2: #{tpu_custom_call.1} parent=0 // pred_check
    _
  $region3: #{tpu_custom_call.1} parent=0 // pred_check_branch
    %9 = sbr.rel (0) target = $region5
  $region4: #{tpu_custom_call.1} parent=0 // pred_region
    _
  $region5: #{tpu_custom_call.1} parent=0 // pred_fallthru
    _
  // Predicated region
  $region6: #{tpu_custom_call.1} parent=0 // pred_check
    _
  $region7: #{tpu_custom_call.1} parent=0 // pred_check_branch
    %11 = sbr.rel (0) target = $region9
  $region8: #{tpu_custom_call.1} parent=0 // pred_region
    _
  $region9: #{tpu_custom_call.1} parent=0 // pred_fallthru
    _
  // Predicated region
  $region10: #{tpu_custom_call.1} parent=0 // pred_check
    _
  $region11: #{tpu_custom_call.1} parent=0 // pred_check_branch
    %13 = sbr.rel (0) target = $region13
  $region12: #{tpu_custom_call.1} parent=0 // pred_region
    _
  $region13: #{tpu_custom_call.1} parent=0 // pred_fallthru
    _
  %v14 = vld [vmem:[%s0] sm:$0xff]
  %v15 = vld [vmem:[%s0 + $0x8] sm:$0xff]
  %v16 = vld [vmem:[%s1] sm:$0xff]
  %v17 = vld [vmem:[%s1 + $0x8] sm:$0xff]
  %v18 = vld [vmem:[%s2] sm:$0xff]
  %v19 = vld [vmem:[%s2 + $0x8] sm:$0xff]
  %vm20 = vcmask 261120
  %v21 = vsel %vm20, %v14, -inf
  %22 = vmax.xlane.f32.xlu0 %v21
  %v23 = vpop.xlane.xlu0 %22
  %v24 = vsel %vm20, %v15, -inf
  %25 = vmax.xlane.f32.xlu0 %v24
  %v26 = vpop.xlane.xlu0 %25
  %v27 = vsub.f32 %v14, %v23
  %v28 = vsub.f32 %v15, %v26
  %v29 = vmul.f32 %v27, 1.442695
  %v30 = vpow.pop %v29
  %v31 = vmul.f32 %v28, 1.442695
  %v32 = vpow.pop %v31
  %v33 = vsel %vm20, %v30, 0.0
  %34 = vadd.xlane.f32.xlu0 %v33
  %v35 = vpop.xlane.xlu0 %34
  %v36 = vsel %vm20, %v32, 0.0
  %37 = vadd.xlane.f32.xlu0 %v36
  %v38 = vpop.xlane.xlu0 %37
  %v39 = vlaneseq
  %v40 = vand.u32 %v39, 127
  %41 = vset.pattern.permute.xlu0 0
  %42 = vperm.xlu0 %41, %v16
  %v43 = vpop.permute.xlu0 %42
  %44 = vset.pattern.permute.xlu0 0
  %45 = vperm.xlu0 %44, %v17
  %v46 = vpop.permute.xlu0 %45
  %vm47 = vcmp.eq.s32.totalorder %v40, %v43
  %vm48 = vcmp.eq.s32.totalorder %v40, %v46
  %v49 = vsel %vm47, %v27, 0.0
  %v50 = vsel %vm48, %v28, 0.0
  %v51 = vsel %vm20, %v49, 0.0
  %52 = vadd.xlane.f32.xlu0 %v51
  %v53 = vpop.xlane.xlu0 %52
  %v54 = vsel %vm20, %v50, 0.0
  %55 = vadd.xlane.f32.xlu0 %v54
  %v56 = vpop.xlane.xlu0 %55
  %v57 = vlog2.pop %v35
  %v58 = vmul.f32 %v57, 0.6931472
  %v59 = vlog2.pop %v38
  %v60 = vmul.f32 %v59, 0.6931472
  %v61 = vsub.f32 %v58, %v53
  %v62 = vsub.f32 %v60, %v56
  %v63 = vmul.f32 %v61, %v18
  %v64 = vmul.f32 %v62, %v19
  %vm65 = vcmask 7168
  %66 = vst.msk [vmem:[%s3] sm:$0xff] %vm65, %v63
  %67 = vst.msk [vmem:[%s3 + $0x8] sm:$0xff] %vm65, %v64
  // Predicated region
  $region14: #{tpu_custom_call.1} parent=0 // pred_check
    _
  $region15: #{tpu_custom_call.1} parent=0 // pred_check_branch
    %69 = sbr.rel (0) target = $region17
  $region16: #{tpu_custom_call.1} parent=0 // pred_region
    _
  $region17: #{tpu_custom_call.1} parent=0 // pred_fallthru
    _
  // Predicated region
  $region18: #{tpu_custom_call.1} parent=0 // pred_check
    _
  $region19: #{tpu_custom_call.1} parent=0 // pred_check_branch
    %71 = sbr.rel (0) target = $region21
  $region20: #{tpu_custom_call.1} parent=0 // pred_region
    _
  $region21: #{tpu_custom_call.1} parent=0 // pred_fallthru
    _

</llo_original>
